<compile_context>
chip_gen: v7x
topology: tpu7x:2x2x1
jax: 0.10.0
libtpu: 0.0.40
codegen_flags: <defaults>
</compile_context>

<pallas_src>
import functools

import jax
import jax.numpy as jnp
import numpy as np
from jax.experimental import pallas as pl
from jax.experimental.pallas import tpu as pltpu


# ---------------------------------------------------------------------------
# Deterministic parameter / buffer construction (mirrors module __init__/init)
# ---------------------------------------------------------------------------
def build_2d_sincos_posemb(h, w, embed_dim, temperature=10000.0):
    """MoCo-v3 style fixed 2D sin-cos positional embedding, shape (1, h*w, D)."""
    assert embed_dim % 4 == 0, "embed_dim must be divisible by 4"
    grid_w = jnp.arange(w, dtype=jnp.float32)
    grid_h = jnp.arange(h, dtype=jnp.float32)
    grid_w, grid_h = jnp.meshgrid(grid_w, grid_h, indexing="ij")
    pos_dim = embed_dim // 4
    omega = jnp.arange(pos_dim, dtype=jnp.float32) / pos_dim
    omega = 1.0 / (temperature ** omega)
    out_w = jnp.einsum("m,d->md", grid_w.reshape(-1), omega)
    out_h = jnp.einsum("m,d->md", grid_h.reshape(-1), omega)
    pos_emb = jnp.concatenate(
        [jnp.sin(out_w), jnp.cos(out_w), jnp.sin(out_h), jnp.cos(out_h)], axis=1
    )[None, :, :]
    return pos_emb.astype(jnp.float32)


def init_params(key, vocab_size, dim_tokens, h_posemb, w_posemb, init_std=0.02):
    k_tok, k_mod = jax.random.split(key)
    # nn.Embedding default init: N(0, 1)
    token_emb = jax.random.normal(k_tok, (vocab_size, dim_tokens), dtype=jnp.float32)
    # mod_emb: N(0, init_std)
    mod_emb = init_std * jax.random.normal(k_mod, (1, 1, dim_tokens), dtype=jnp.float32)
    pos_emb = build_2d_sincos_posemb(h_posemb, w_posemb, dim_tokens)  # (1, L, D)
    return token_emb, pos_emb, mod_emb


# ---------------------------------------------------------------------------
# Tiling / hardware helpers
# ---------------------------------------------------------------------------
def _choose_tile_m(M, target):
    """Pick (tile_m, num_tiles, M_pad).

    tile_m is a multiple of 8, close to `target`, preferring (a) no padding
    (tile_m divides M, so no x_pad[:M] slice) and (b) an even tile count so
    both v7x TensorCores get balanced work.
    """
    target = max(8, (int(target) // 8) * 8)
    cap = min(target, M)
    cap = (cap // 8) * 8
    best = None  # (key, tm, num_tiles, M_pad); key = (odd_tiles, -tm)
    if cap >= 8:
        for tm in range(cap, max(7, cap // 2 - 1), -8):
            if M % tm == 0:
                nt = M // tm
                key = (nt % 2, -tm)
                if best is None or key < best[0]:
                    best = (key, tm, nt, M)
    if best is not None:
        return best[1], best[2], best[3]
    # No good divisor in range -> pad (padded ids are 0, a valid index).
    tm = max(8, cap)
    nt = -(-M // tm)
    return tm, nt, nt * tm


def _vmem_capacity_bytes():
    """Physical VMEM of the current generation (v7x=64MiB, v5e/v6e=128MiB)."""
    try:
        info = pltpu.get_tpu_info()
        for name in ("vmem_capacity_bytes", "vmem_bytes", "vmem_size_bytes"):
            v = getattr(info, name, None)
            if v:
                return int(v)
    except Exception:
        pass
    return 64 << 20  # conservative (v7x) default if the query is unavailable


# ---------------------------------------------------------------------------
# Pallas kernels
# ---------------------------------------------------------------------------
def _onehot_embed_kernel(ids_ref, table_ref, x_ref):
    """VMEM-resident table gather via one-hot MXU matmul.

    ids_ref   : (tm, 1)  int32 VMEM block of flat token ids
    table_ref : (V, D)   embedding table, resident in VMEM (constant index_map)
    x_ref     : (tm, D)  output tile
    """
    tm = x_ref.shape[0]
    V = table_ref.shape[0]
    ids = ids_ref[...]                                          # (tm, 1)
    cols = jax.lax.broadcasted_iota(jnp.int32, (tm, V), 1)      # (tm, V)
    onehot = (ids == cols).astype(table_ref.dtype)              # exact 0/1
    # HIGHEST precision keeps the f32 gather bit-faithful on the MXU.
    x_ref[...] = jnp.dot(
        onehot,
        table_ref[...],
        preferred_element_type=jnp.float32,
        precision=jax.lax.Precision.HIGHEST,
    ).astype(x_ref.dtype)


def _dma_gather_kernel(ids_ref, table_hbm, x_ref, copy_sem):
    """Huge-vocab fallback: per-row DMA gather from the HBM table.

    ids_ref   : (tm,)  int32 SMEM block (pipelined per grid step)
    table_hbm : (V, D) embedding table left in HBM (memory_space=pl.ANY)
    x_ref     : (tm, D) VMEM output tile (DMA destination)
    copy_sem  : single shared DMA semaphore
    """
    tm = x_ref.shape[0]

    # Issue all row copies first: all SMEM id reads happen before any .wait(),
    # and the loop is unrolled so descriptor issues pack back-to-back.
    def _issue(m, carry):
        tok = ids_ref[m]
        pltpu.make_async_copy(
            table_hbm.at[pl.ds(tok, 1)],   # (1, D) row of the table in HBM
            x_ref.at[pl.ds(m, 1)],         # (1, D) row of the output tile
            copy_sem,                      # all copies share one semaphore
        ).start()
        return carry

    jax.lax.fori_loop(0, tm, _issue, 0, unroll=8)

    # Drain: wait once per issued copy on the shared semaphore.  The wait
    # amount depends only on the transfer size (all copies are (1, D) rows),
    # so the source row index in the wait descriptor is irrelevant.
    def _drain(m, carry):
        pltpu.make_async_copy(
            table_hbm.at[pl.ds(0, 1)],
            x_ref.at[pl.ds(m, 1)],
            copy_sem,
        ).wait()
        return carry

    jax.lax.fori_loop(0, tm, _drain, 0, unroll=8)


# ---------------------------------------------------------------------------
# Forward pass wrapper
# ---------------------------------------------------------------------------
@functools.partial(
    jax.jit,
    static_argnames=("patch_size", "image_size", "tile_m", "force_dma_fallback"),
)
def image_token_encoder_embedding(ids, token_emb, pos_emb, mod_emb, *,
                                  patch_size=4, image_size=16, tile_m=512,
                                  force_dma_fallback=False):
    """Forward pass equivalent of ImageTokenEncoderEmbedding.forward.

    ids: (B, H, W) int32 token indices.
    Returns dict with 'tensor', 'x' (B, L, D) and 'emb' (B, L, D).
    """
    B = ids.shape[0]
    ids_flat = ids.reshape(B, -1).astype(jnp.int32)
    L = ids_flat.shape[1]
    V, D = token_emb.shape

    # Same check as the PyTorch module.
    assert (L ** 0.5) % 1 == 0, "Input tokens are not squared"
    input_size = int(L ** 0.5) * patch_size
    # TODO(synk): interpolate_pos_encoding path (bicubic resize of pos_emb) not
    # implemented for mismatched input sizes; this script uses matching sizes.
    assert (input_size, input_size) == (image_size, image_size)

    # --- Tiling: fold all batch rows into lane-dense (tile_m, D) output tiles.
    M = B * L
    tm, num_tiles, M_pad = _choose_tile_m(M, tile_m)
    ids_lin = ids_flat.reshape(-1)
    if M_pad != M:
        ids_lin = jnp.pad(ids_lin, (0, M_pad - M))   # pad with valid id 0

    # --- Path selection (trace-time, per TPU generation).
    vmem_cap = _vmem_capacity_bytes()
    table_bytes = V * D * token_emb.dtype.itemsize
    # 2x table (pipeline may double-buffer even a resident block), 2x output
    # tile, 2x ids tile; keep comfortable headroom for regalloc/spills.
    resident_budget = 2 * table_bytes + 2 * tm * D * 4 + 2 * tm * 4
    use_resident = ((not force_dma_fallback)
                    and V <= 4096
                    and resident_budget <= (vmem_cap * 3) // 5)

    if use_resident:
        vmem_limit = int(min(vmem_cap - (4 << 20),
                             max(32 << 20, resident_budget + (8 << 20))))
        x_pad = pl.pallas_call(
            _onehot_embed_kernel,
            out_shape=jax.ShapeDtypeStruct((M_pad, D), token_emb.dtype),
            grid=(num_tiles,),
            in_specs=[
                # token ids, (tm, 1) VMEM block per grid step
                pl.BlockSpec((tm, 1), lambda i: (i, 0)),
                # full table, constant index_map -> fetched once, VMEM-resident
                pl.BlockSpec((V, D), lambda i: (0, 0)),
            ],
            out_specs=pl.BlockSpec((tm, D), lambda i: (i, 0)),
            compiler_params=pltpu.CompilerParams(
                dimension_semantics=("parallel",),
                vmem_limit_bytes=vmem_limit,
            ),
        )(ids_lin.reshape(M_pad, 1), token_emb)
    else:
        # TODO(synk): a VMEM-resident jnp.take gather for mid-size vocabs
        # (V > 4096 but table still fitting VMEM) would beat both paths there.
        x_pad = pl.pallas_call(
            _dma_gather_kernel,
            out_shape=jax.ShapeDtypeStruct((M_pad, D), token_emb.dtype),
            grid=(num_tiles,),
            in_specs=[
                # per-step (tm,) ids block in SMEM (no whole-array prefetch)
                pl.BlockSpec((tm,), lambda i: (i,),
                             memory_space=pltpu.MemorySpace.SMEM),
                # table stays in HBM; rows are gathered by manual DMA
                pl.BlockSpec(memory_space=pl.ANY),
            ],
            out_specs=pl.BlockSpec((tm, D), lambda i: (i, 0)),
            scratch_shapes=[pltpu.SemaphoreType.DMA],   # single shared DMA sem
            compiler_params=pltpu.CompilerParams(
                dimension_semantics=("parallel",),
            ),
        )(ids_lin, token_emb)

    x = (x_pad[:M] if M_pad != M else x_pad).reshape(B, L, D)

    # emb is batch/id-independent: compute once in the wrapper and broadcast.
    emb = jnp.broadcast_to((pos_emb + mod_emb).astype(x.dtype), (B, L, D))

    return {"tensor": ids, "x": x, "emb": emb}


# ---------------------------------------------------------------------------
# Demo / check
# ---------------------------------------------------------------------------
if __name__ == "__main__":
    # Module config (small): vocab=64, patch=4, image=16 -> 4x4 = 16 patches.
    vocab_size = 64
    dim_tokens = 128          # lane-dense (multiple of 128)
    patch_size = 4
    image_size = 16
    h_posemb = image_size // patch_size
    w_posemb = image_size // patch_size

    key = jax.random.PRNGKey(0)
    k_param, k_ids = jax.random.split(key)
    token_emb, pos_emb, mod_emb = init_params(
        k_param, vocab_size, dim_tokens, h_posemb, w_posemb
    )

    B = 2
    ids = jax.random.randint(
        k_ids, (B, h_posemb, w_posemb), 0, vocab_size, dtype=jnp.int32
    )

    # Main path: VMEM-resident table + one-hot MXU gather (vocab fits VMEM).
    out = image_token_encoder_embedding(
        ids, token_emb, pos_emb, mod_emb,
        patch_size=patch_size, image_size=image_size,
    )
    jax.block_until_ready(out)

    # Huge-vocab fallback (HBM table + per-row DMA gather), forced here so both
    # code paths are exercised and checked.
    out_dma = image_token_encoder_embedding(
        ids, token_emb, pos_emb, mod_emb,
        patch_size=patch_size, image_size=image_size, force_dma_fallback=True,
    )
    jax.block_until_ready(out_dma)

    # Pure-JAX reference for correctness.
    ids_flat = ids.reshape(B, -1)
    x_ref = token_emb[ids_flat]                                  # (B, L, D)
    emb_ref = jnp.broadcast_to(pos_emb + mod_emb, x_ref.shape)   # (B, L, D)

    L = h_posemb * w_posemb
    assert out["x"].shape == (B, L, dim_tokens)
    assert out["emb"].shape == (B, L, dim_tokens)
    np.testing.assert_allclose(np.asarray(out["x"]), np.asarray(x_ref),
                               rtol=1e-5, atol=1e-5)
    np.testing.assert_array_equal(np.asarray(out_dma["x"]), np.asarray(x_ref))
    np.testing.assert_allclose(np.asarray(out["emb"]), np.asarray(emb_ref),
                               rtol=1e-6, atol=1e-6)

    print("KERNEL_OK")
</pallas_src>

<mosaic_0001>
module attributes {stable_mosaic.version = 11 : i64} {
  func.func @_onehot_embed_kernel(%arg0: i32, %arg1: memref<16x1xi32, #tpu.memory_space<vmem>>, %arg2: memref<64x128xf32, #tpu.memory_space<vmem>>, %arg3: memref<16x128xf32, #tpu.memory_space<vmem>>) attributes {dimension_semantics = [#tpu.dimension_semantics<parallel>], iteration_bounds = array<i64: 2>, scalar_prefetch = 0 : i64, scratch_operands = 0 : i64, tpu.core_type = #tpu.core_type<tc>, window_params = [{transform_indices = @transform_0, window_bounds = array<i64: 16, 1>}, {pipeline_mode = #tpu.pipeline_mode<synchronous>, transform_indices = @transform_1, window_bounds = array<i64: 64, 128>}, {transform_indices = @transform_2, window_bounds = array<i64: 16, 128>}]} {
    %c0 = arith.constant 0 : index
    %c0_0 = arith.constant 0 : index
    %0 = vector.load %arg1[%c0, %c0_0] : memref<16x1xi32, #tpu.memory_space<vmem>>, vector<16x1xi32>
    %1 = tpu.iota {dimensions = array<i32: 1>} : vector<16x64xi32>
    %2 = vector.broadcast %0 : vector<16x1xi32> to vector<16x64xi32>
    %3 = arith.cmpi eq, %2, %1 : vector<16x64xi32>
    %4 = arith.extui %3 : vector<16x64xi1> to vector<16x64xi32>
    %5 = arith.sitofp %4 : vector<16x64xi32> to vector<16x64xf32>
    %c0_1 = arith.constant 0 : index
    %c0_2 = arith.constant 0 : index
    %6 = vector.load %arg2[%c0_1, %c0_2] : memref<64x128xf32, #tpu.memory_space<vmem>>, vector<64x128xf32>
    %cst = arith.constant dense<0.000000e+00> : vector<16x128xf32>
    %7 = tpu.matmul %5, %6, %cst {dimension_numbers = #tpu.dot_dimension_numbers<[1], [0], [0], [1], [0, 0, 1, 1], [], []>, precision = #tpu.contract_precision<fp32>} : vector<16x64xf32>, vector<64x128xf32>, vector<16x128xf32> -> vector<16x128xf32>
    %c0_3 = arith.constant 0 : index
    %c0_4 = arith.constant 0 : index
    %8 = vector.load %arg3[%c0_3, %c0_4] : memref<16x128xf32, #tpu.memory_space<vmem>>, vector<16x128xf32>
    tpu.vector_store %arg3[%c0_3, %c0_4], %7 {strides = array<i32>} : memref<16x128xf32, #tpu.memory_space<vmem>>, vector<16x128xf32>,
    return
  }
  func.func @transform_0(%arg0: i32) -> (i32, i32) {
    %c0_i32 = arith.constant 0 : i32
    %c0_i32_0 = arith.constant 0 : i32
    return %arg0, %c0_i32 : i32, i32
  }
  func.func @transform_1(%arg0: i32) -> (i32, i32) {
    %c0_i32 = arith.constant 0 : i32
    %c0_i32_0 = arith.constant 0 : i32
    %c0_i32_1 = arith.constant 0 : i32
    return %c0_i32, %c0_i32_0 : i32, i32
  }
  func.func @transform_2(%arg0: i32) -> (i32, i32) {
    %c0_i32 = arith.constant 0 : i32
    %c0_i32_0 = arith.constant 0 : i32
    return %arg0, %c0_i32 : i32, i32
  }
}

</mosaic_0001>

<llo_original>
// kernel: image_token_encoder_embedding.1
$region0: #{image_token_encoder_embedding.1}
  #allocation0 [shape = 'u32[]', space=smem, size = 0x4, offset = 0x4, fixed_abs, tag = 'smem constant byte address 0x4 - core index']
  #allocation1 [shape = 'u32[144,128]{1,0:T(1,128)}', space=vmem, size = 0x12000, scoped, tag = 'internal scratch']
  %s0 = inlined_call_operand.vmem [shape: s32[32,1], index: 0, kind: input, shape index: {}]
  %s1 = inlined_call_operand.hbm [shape: f32[64,128], index: 1, kind: input, shape index: {}]
  %s2 = inlined_call_operand.hbm [shape: f32[32,128], index: 2, kind: output, shape index: {}]
  %s3 = sld [smem:[#allocation0]]
  $region45: #{image_token_encoder_embedding.1} parent=0
    _
  %s5 = ssub.s32 1, %s3
  %s6 = scalar_select 0, %s5, %s3
  $region1: #{image_token_encoder_embedding.1} parent=0
    #allocation2 [shape = 'u8[32768]{0}', space=vmem, size = 0x8000, scoped, tag = 'input window, operand 1, single buffered']
    #allocation3 [shape = 's32[2]{0}', space=sflag, size = 0x8, scoped, tag = 'scoped memory for image_token_encoder_embedding.1']
    #allocation4 [shape = 's32[2]{0}', space=sflag, size = 0x8, scoped, tag = 'scoped memory for image_token_encoder_embedding.1']
    #allocation5 [shape = 'u8[16384]{0}', space=vmem, size = 0x4000, scoped, tag = 'output window, operand 0']
    %7 = vsyncpa [#allocation3], 0
    %8 = vsyncpa [#allocation4], 0
    %s9 = scalar_lea.sflag [#allocation4], 1
    %10 = vsyncpa %s9, 0
    loop: start=0, step=1, limit=4
    $region2: #{image_token_encoder_embedding.1} parent=1 // loop_pre_header
      _
    $region3: #{image_token_encoder_embedding.1} parent=1 // loop_header
      %s12 = sphi 0, %s16
      %p13 = scmp.ge.s32.totalorder %s12, 4
      %s22 = sphi 0, %s24
      %s25 = sphi 0, %s22
      %s26 = sphi 0, %s25
      %s42 = sphi 0, %s26
      %s46 = sphi 0, %s46
      %s48 = sphi 0, %s46
      %s49 = sphi 0, %s48
      %s63 = sphi 0, %s49
      %s69 = sphi 0, %s71
      %s72 = sphi 0, %s69
      %s73 = sphi 0, %s72
      %s89 = sphi 0, %s73
    $region4: #{image_token_encoder_embedding.1} parent=1 // loop_header_branch
      %15 = sbr.rel (%p13) target = $region8
    $region5: #{image_token_encoder_embedding.1} parent=1 // loop_body
      %s17 = ssub.s32 %s12, 1
      %s18 = ssub.s32 %s12, 2
      %s19 = sadd.s32 %s12, 1
      %s20 = ssub.s32 %s12, %s19
      %p21 = scmp.eq.s32.totalorder %s20, 0
      %s23 = sadd.s32 %s22, 1
      %s24 = scalar_select %p21, %s22, %s23
      %p27 = pneg %p21
      %p28 = scmp.eq.s32.totalorder %s12, 1
      %p29 = por %p27, %p28
      %p30 = scmp.ne.s32.totalorder %s22, %s25
      %p31 = scmp.eq.s32.totalorder %s12, 0
      %p32 = por %p30, %p31
      %p33 = scmp.ne.s32.totalorder %s22, %s25
      %p34 = scmp.eq.s32.totalorder %s17, 1
      %p35 = por %p33, %p34
      %p36 = scmp.ne.s32.totalorder %s25, %s26
      %p37 = scmp.eq.s32.totalorder %s17, 0
      %p38 = por %p36, %p37
      %p39 = scmp.ne.s32.totalorder %s25, %s26
      %p40 = scmp.eq.s32.totalorder %s18, 1
      %p41 = por %p39, %p40
      %p43 = scmp.ne.s32.totalorder %s26, %s42
      %p44 = scmp.eq.s32.totalorder %s18, 0
      %p45 = por %p43, %p44
      %s47 = sadd.s32 %s46, 1
      %p50 = scmp.eq.s32.totalorder %s12, 1
      %p51 = scmp.ne.s32.totalorder %s46, %s48
      %p52 = scmp.eq.s32.totalorder %s12, 0
      %p53 = por %p51, %p52
      %p54 = scmp.ne.s32.totalorder %s46, %s48
      %p55 = scmp.eq.s32.totalorder %s17, 1
      %p56 = por %p54, %p55
      %p57 = scmp.ne.s32.totalorder %s48, %s49
      %p58 = scmp.eq.s32.totalorder %s17, 0
      %p59 = por %p57, %p58
      %p60 = scmp.ne.s32.totalorder %s48, %s49
      %p61 = scmp.eq.s32.totalorder %s18, 1
      %p62 = por %p60, %p61
      %p64 = scmp.ne.s32.totalorder %s49, %s63
      %p65 = scmp.eq.s32.totalorder %s18, 0
      %p66 = por %p64, %p65
      %s67 = ssub.s32 %s12, %s19
      %p68 = scmp.eq.s32.totalorder %s67, 0
      %s70 = sadd.s32 %s69, 1
      %s71 = scalar_select %p68, %s69, %s70
      %p74 = pneg %p68
      %p75 = scmp.eq.s32.totalorder %s12, 1
      %p76 = por %p74, %p75
      %p77 = scmp.ne.s32.totalorder %s69, %s72
      %p78 = scmp.eq.s32.totalorder %s12, 0
      %p79 = por %p77, %p78
      %p80 = scmp.ne.s32.totalorder %s69, %s72
      %p81 = scmp.eq.s32.totalorder %s17, 1
      %p82 = por %p80, %p81
      %p83 = scmp.ne.s32.totalorder %s72, %s73
      %p84 = scmp.eq.s32.totalorder %s17, 0
      %p85 = por %p83, %p84
      %p86 = scmp.ne.s32.totalorder %s72, %s73
      %p87 = scmp.eq.s32.totalorder %s18, 1
      %p88 = por %p86, %p87
      %p90 = scmp.ne.s32.totalorder %s73, %s89
      %p91 = scmp.eq.s32.totalorder %s18, 0
      %p92 = por %p90, %p91
      %p93 = scmp.le.s32.totalorder 1, %s12
      %p94 = scmp.lt.s32.totalorder %s12, 3
      %p95 = pnand %p93, %p94
      %p96 = pneg %p95
      // Predicated region
      $region9: #{image_token_encoder_embedding.1} parent=5 // pred_check
        _
      $region10: #{image_token_encoder_embedding.1} parent=5 // pred_check_branch
        %98 = sbr.rel (%p95) target = $region12
      $region11: #{image_token_encoder_embedding.1} parent=5 // pred_region
        %s99 = ssub.s32 %s12, 1
        // Predicated region
        $region13: #{image_token_encoder_embedding.1} parent=11 // pred_check
          %p100 = pneg %p59
        $region14: #{image_token_encoder_embedding.1} parent=11 // pred_check_branch
          %102 = sbr.rel (%p100) target = $region16
        $region15: #{image_token_encoder_embedding.1} parent=11 // pred_region
          %s104 = ssub.s32 1024, 1024
          %105 = vsyncadd [#allocation3], %s104
          %s106 = sshll.u32 [#allocation2], 4
          %s107 = int_to_ptr.vmem [resolvable:$true] %s106
          %112 = dma.hbm_to_vmem [thread:$0]  %s1, 1024, %s107, [#allocation3], 128, 128, 8
        $region16: #{image_token_encoder_embedding.1} parent=11 // pred_fallthru
          _
      $region12: #{image_token_encoder_embedding.1} parent=5 // pred_fallthru
        _
      %p113 = scmp.lt.s32.totalorder %s12, 2
      // Predicated region
      $region17: #{image_token_encoder_embedding.1} parent=5 // pred_check
        %p114 = pneg %p113
      $region18: #{image_token_encoder_embedding.1} parent=5 // pred_check_branch
        %116 = sbr.rel (%p114) target = $region20
      $region19: #{image_token_encoder_embedding.1} parent=5 // pred_region
        // Predicated region
        $region21: #{image_token_encoder_embedding.1} parent=19 // pred_check
          %p117 = pneg %p32
        $region22: #{image_token_encoder_embedding.1} parent=19 // pred_check_branch
          %119 = sbr.rel (%p117) target = $region24
        $region23: #{image_token_encoder_embedding.1} parent=19 // pred_region
          %s120 = smul.u32 2, %s12
          %p121 = scmp.lt.s32.totalorder %s120, 3
          %s122 = scalar_select %p121, %s120, 3
          %s123 = smul.addr %s122, 8
          %s124 = scalar_lea.vmem %s0, %s123
          %s125 = smul.u32 2, %s12
        $region24: #{image_token_encoder_embedding.1} parent=19 // pred_fallthru
          _
      $region20: #{image_token_encoder_embedding.1} parent=5 // pred_fallthru
        _
      %p126 = scmp.le.s32.totalorder 1, %s12
      %p127 = scmp.lt.s32.totalorder %s12, 3
      %p128 = pnand %p126, %p127
      %p129 = pneg %p128
      // Predicated region
      $region25: #{image_token_encoder_embedding.1} parent=5 // pred_check
        _
      $region26: #{image_token_encoder_embedding.1} parent=5 // pred_check_branch
        %131 = sbr.rel (%p128) target = $region28
      $region27: #{image_token_encoder_embedding.1} parent=5 // pred_region
        %s132 = ssub.s32 %s12, 1
        // Predicated region
        $region29: #{image_token_encoder_embedding.1} parent=27 // pred_check
          %p133 = pneg %p59
        $region30: #{image_token_encoder_embedding.1} parent=27 // pred_check_branch
          %135 = sbr.rel (%p133) target = $region32
        $region31: #{image_token_encoder_embedding.1} parent=27 // pred_region
          %136 = dma.done [#allocation3], 1024
        $region32: #{image_token_encoder_embedding.1} parent=27 // pred_fallthru
          _
        %s137 = smul.u32 2, %s17
        %p138 = scmp.lt.s32.totalorder %s137, 3
        %s139 = scalar_select %p138, %s137, 3
        %s140 = smul.addr %s139, 8
        %s141 = scalar_lea.vmem %s0, %s140
        %p142 = pneg %p38
        %p143 = pneg %p35
        %p144 = pneg %p59
        %p145 = pneg %p56
        %p146 = pneg %p85
        %p147 = pneg %p82
        %s148 = sand.u32 %s72, 1
        %s149 = scalar_lea.sflag [#allocation4], %s148
        %s150 = sand.u32 %s72, 1
        %s151 = smul.addr %s150, 16
        %s152 = scalar_lea.vmem [#allocation5], %s151
        %s153 = smul.u32 2, %s17
        %p154 = scmp.lt.s32.totalorder %s153, 3
        %s155 = scalar_select %p154, %s153, 3
        %s156 = smul.addr %s155, 8
        %s157 = scalar_lea.vmem %s0, %s156
        %s158 = smul.u32 2, %s17
        %s159 = smul.u32 2, %s17
        %v160 = vld [vmem:[%s157] sm:$0xff]
        %v161 = vld [vmem:[%s157 + $0x8] sm:$0xff]
        %v162 = vlaneseq
        %v163 = vand.u32 %v162, 127
        %164 = vset.pattern.permute.xlu0 0
        %165 = vperm.xlu0 %164, %v160
        %v166 = vpop.permute.xlu0 %165
        %167 = vset.pattern.permute.xlu0 0
        %168 = vperm.xlu0 %167, %v161
        %v169 = vpop.permute.xlu0 %168
        %vm170 = vcmp.eq.s32.totalorder %v166, %v163
        %vm171 = vcmp.eq.s32.totalorder %v169, %v163
        %v172 = vsel %vm170, 1, 0
        %v173 = vsel %vm171, 1, 0
        %v174 = vcvt.s32.f32 %v172
        %v175 = vcvt.s32.f32 %v173
        %v176 = vld [vmem:[#allocation2] sm:$0xff]
        %v177 = vld [vmem:[#allocation2 + $0x8] sm:$0xff]
        %v178 = vld [vmem:[#allocation2 + $0x10] sm:$0xff]
        %v179 = vld [vmem:[#allocation2 + $0x18] sm:$0xff]
        %v180 = vld [vmem:[#allocation2 + $0x20] sm:$0xff]
        %v181 = vld [vmem:[#allocation2 + $0x28] sm:$0xff]
        %v182 = vld [vmem:[#allocation2 + $0x30] sm:$0xff]
        %v183 = vld [vmem:[#allocation2 + $0x38] sm:$0xff]
        %vm184 = vcmask 523264
        %v186 = vsel %vm184, %v174, 0
        %v189 = vsel %vm184, %v175, 0
        %191 = vmatprep.subr.mxu0 0.0
        %v192 = vand.u32 %v176, 4294901760
        %193 = vmatpush1.msra.mxu0 %v192
        %194 = vmatprep.subr.mxu0 0.0
        %v195 = vand.u32 %v177, 4294901760
        %196 = vmatpush1.msra.mxu0 %v195
        %197 = vmatprep.subr.mxu0 0.0
        %v198 = vand.u32 %v178, 4294901760
        %199 = vmatpush1.msra.mxu0 %v198
        %200 = vmatprep.subr.mxu0 0.0
        %v201 = vand.u32 %v179, 4294901760
        %202 = vmatpush1.msra.mxu0 %v201
        %203 = vmatprep.subr.mxu0 0.0
        %v204 = vand.u32 %v180, 4294901760
        %205 = vmatpush1.msra.mxu0 %v204
        %206 = vmatprep.subr.mxu0 0.0
        %v207 = vand.u32 %v181, 4294901760
        %208 = vmatpush1.msra.mxu0 %v207
        %209 = vmatprep.subr.mxu0 0.0
        %v210 = vand.u32 %v182, 4294901760
        %211 = vmatpush1.msra.mxu0 %v210
        %212 = vmatprep.subr.mxu0 0.0
        %v213 = vand.u32 %v183, 4294901760
        %214 = vmatpush1.msra.mxu0 %v213
        %215 = vmatprep.subr.mxu0 0.0
        %216 = vmatpush1.msra.mxu0 0.0
        %217 = vmatprep.subr.mxu0 0.0
        %218 = vmatpush1.msra.mxu0 0.0
        %219 = vmatprep.subr.mxu0 0.0
        %220 = vmatpush1.msra.mxu0 0.0
        %221 = vmatprep.subr.mxu0 0.0
        %222 = vmatpush1.msra.mxu0 0.0
        %223 = vmatprep.subr.mxu0 0.0
        %224 = vmatpush1.msra.mxu0 0.0
        %225 = vmatprep.subr.mxu0 0.0
        %226 = vmatpush1.msra.mxu0 0.0
        %227 = vmatprep.subr.mxu0 0.0
        %228 = vmatpush1.msra.mxu0 0.0
        %229 = vmatprep.subr.mxu0 0.0
        %230 = vmatpush1.msra.mxu0 0.0
        %231 = vmatprep.subr.mxu0 0.0
        %232 = vmatpush1.msra.mxu0 0.0
        %233 = vmatprep.subr.mxu0 0.0
        %234 = vmatpush1.msra.mxu0 0.0
        %235 = vmatprep.subr.mxu0 0.0
        %236 = vmatpush1.msra.mxu0 0.0
        %237 = vmatprep.subr.mxu0 0.0
        %238 = vmatpush1.msra.mxu0 0.0
        %239 = vmatprep.subr.mxu0 0.0
        %240 = vmatpush1.msra.mxu0 0.0
        %241 = vmatprep.subr.mxu0 0.0
        %242 = vmatpush1.msra.mxu0 0.0
        %243 = vmatprep.subr.mxu0 0.0
        %244 = vmatpush1.msra.mxu0 0.0
        %245 = vmatprep.subr.mxu0 0.0
        %246 = vmatpush1.msra.mxu0 0.0
        %247 = vmatprep.subr.mxu0 0.0
        %248 = vmatpush1.msra.mxu0 0.0
        %249 = vmatprep.subr.mxu0 0.0
        %250 = vmatpush1.msra.mxu0 0.0
        %251 = vmatprep.subr.mxu0 0.0
        %252 = vmatpush1.msra.mxu0 0.0
        %253 = vmatprep.subr.mxu0 0.0
        %254 = vmatpush1.msra.mxu0 0.0
        %255 = vmatprep.subr.mxu0 0.0
        %256 = vmatpush1.msra.mxu0 0.0
        %257 = vmatprep.subr.mxu0 0.0
        %258 = vmatpush1.msra.mxu0 0.0
        %259 = vmatprep.subr.mxu0 0.0
        %260 = vmatpush1.msra.mxu0 0.0
        %261 = vmatprep.subr.mxu0 0.0
        %262 = vmatpush1.msra.mxu0 0.0
        %263 = vmatprep.mubr.f32.mxu0 0.0
        %v264 = vand.u32 %v186, 4294901760
        %v265 = vsub.f32 %v186, %v264
        %v266 = vand.u32 %v265, 4294901760
        %v267 = vsub.f32 %v265, %v266
        %v268 = vand.u32 %v267, 4294901760
        %269 = vmatmul.mubr.f32.gmra.mrb[0].mxu0 %v268
        %v270 = vpop.f32.mrb[0].mxu0
        %v271 = vadd.f32 0.0, %v270
        %v272 = vpop.f32.mrb[0].mxu0
        %273 = vmatprep.mubr.f32.mxu0 0.0
        %v274 = vand.u32 %v189, 4294901760
        %v275 = vsub.f32 %v189, %v274
        %v276 = vand.u32 %v275, 4294901760
        %v277 = vsub.f32 %v275, %v276
        %v278 = vand.u32 %v277, 4294901760
        %279 = vmatmul.mubr.f32.gmra.mrb[0].mxu0 %v278
        %v280 = vpop.f32.mrb[0].mxu0
        %v281 = vadd.f32 0.0, %v280
        %v282 = vpop.f32.mrb[0].mxu0
        %283 = vdwg.mxu0
        %284 = vmatprep.subr.mxu0 0.0
        %v285 = vand.u32 %v176, 4294901760
        %v286 = vsub.f32 %v176, %v285
        %v287 = vand.u32 %v286, 4294901760
        %v288 = vsub.f32 %v286, %v287
        %v289 = vand.u32 %v288, 4294901760
        %290 = vmatpush1.msra.mxu0 %v289
        %291 = vmatprep.subr.mxu0 0.0
        %v292 = vand.u32 %v177, 4294901760
        %v293 = vsub.f32 %v177, %v292
        %v294 = vand.u32 %v293, 4294901760
        %v295 = vsub.f32 %v293, %v294
        %v296 = vand.u32 %v295, 4294901760
        %297 = vmatpush1.msra.mxu0 %v296
        %298 = vmatprep.subr.mxu0 0.0
        %v299 = vand.u32 %v178, 4294901760
        %v300 = vsub.f32 %v178, %v299
        %v301 = vand.u32 %v300, 4294901760
        %v302 = vsub.f32 %v300, %v301
        %v303 = vand.u32 %v302, 4294901760
        %304 = vmatpush1.msra.mxu0 %v303
        %305 = vmatprep.subr.mxu0 0.0
        %v306 = vand.u32 %v179, 4294901760
        %v307 = vsub.f32 %v179, %v306
        %v308 = vand.u32 %v307, 4294901760
        %v309 = vsub.f32 %v307, %v308
        %v310 = vand.u32 %v309, 4294901760
        %311 = vmatpush1.msra.mxu0 %v310
        %312 = vmatprep.subr.mxu0 0.0
        %v313 = vand.u32 %v180, 4294901760
        %v314 = vsub.f32 %v180, %v313
        %v315 = vand.u32 %v314, 4294901760
        %v316 = vsub.f32 %v314, %v315
        %v317 = vand.u32 %v316, 4294901760
        %318 = vmatpush1.msra.mxu0 %v317
        %319 = vmatprep.subr.mxu0 0.0
        %v320 = vand.u32 %v181, 4294901760
        %v321 = vsub.f32 %v181, %v320
        %v322 = vand.u32 %v321, 4294901760
        %v323 = vsub.f32 %v321, %v322
        %v324 = vand.u32 %v323, 4294901760
        %325 = vmatpush1.msra.mxu0 %v324
        %326 = vmatprep.subr.mxu0 0.0
        %v327 = vand.u32 %v182, 4294901760
        %v328 = vsub.f32 %v182, %v327
        %v329 = vand.u32 %v328, 4294901760
        %v330 = vsub.f32 %v328, %v329
        %v331 = vand.u32 %v330, 4294901760
        %332 = vmatpush1.msra.mxu0 %v331
        %333 = vmatprep.subr.mxu0 0.0
        %v334 = vand.u32 %v183, 4294901760
        %v335 = vsub.f32 %v183, %v334
        %v336 = vand.u32 %v335, 4294901760
        %v337 = vsub.f32 %v335, %v336
        %v338 = vand.u32 %v337, 4294901760
        %339 = vmatpush1.msra.mxu0 %v338
        %340 = vmatprep.subr.mxu0 0.0
        %341 = vmatpush1.msra.mxu0 0.0
        %342 = vmatprep.subr.mxu0 0.0
        %343 = vmatpush1.msra.mxu0 0.0
        %344 = vmatprep.subr.mxu0 0.0
        %345 = vmatpush1.msra.mxu0 0.0
        %346 = vmatprep.subr.mxu0 0.0
        %347 = vmatpush1.msra.mxu0 0.0
        %348 = vmatprep.subr.mxu0 0.0
        %349 = vmatpush1.msra.mxu0 0.0
        %350 = vmatprep.subr.mxu0 0.0
        %351 = vmatpush1.msra.mxu0 0.0
        %352 = vmatprep.subr.mxu0 0.0
        %353 = vmatpush1.msra.mxu0 0.0
        %354 = vmatprep.subr.mxu0 0.0
        %355 = vmatpush1.msra.mxu0 0.0
        %356 = vmatprep.subr.mxu0 0.0
        %357 = vmatpush1.msra.mxu0 0.0
        %358 = vmatprep.subr.mxu0 0.0
        %359 = vmatpush1.msra.mxu0 0.0
        %360 = vmatprep.subr.mxu0 0.0
        %361 = vmatpush1.msra.mxu0 0.0
        %362 = vmatprep.subr.mxu0 0.0
        %363 = vmatpush1.msra.mxu0 0.0
        %364 = vmatprep.subr.mxu0 0.0
        %365 = vmatpush1.msra.mxu0 0.0
        %366 = vmatprep.subr.mxu0 0.0
        %367 = vmatpush1.msra.mxu0 0.0
        %368 = vmatprep.subr.mxu0 0.0
        %369 = vmatpush1.msra.mxu0 0.0
        %370 = vmatprep.subr.mxu0 0.0
        %371 = vmatpush1.msra.mxu0 0.0
        %372 = vmatprep.subr.mxu0 0.0
        %373 = vmatpush1.msra.mxu0 0.0
        %374 = vmatprep.subr.mxu0 0.0
        %375 = vmatpush1.msra.mxu0 0.0
        %376 = vmatprep.subr.mxu0 0.0
        %377 = vmatpush1.msra.mxu0 0.0
        %378 = vmatprep.subr.mxu0 0.0
        %379 = vmatpush1.msra.mxu0 0.0
        %380 = vmatprep.subr.mxu0 0.0
        %381 = vmatpush1.msra.mxu0 0.0
        %382 = vmatprep.subr.mxu0 0.0
        %383 = vmatpush1.msra.mxu0 0.0
        %384 = vmatprep.subr.mxu0 0.0
        %385 = vmatpush1.msra.mxu0 0.0
        %386 = vmatprep.subr.mxu0 0.0
        %387 = vmatpush1.msra.mxu0 0.0
        %388 = vmatprep.mubr.f32.mxu0 0.0
        %v389 = vand.u32 %v186, 4294901760
        %390 = vmatmul.mubr.f32.gmra.mrb[0].mxu0 %v389
        %v391 = vpop.f32.mrb[0].mxu0
        %v392 = vadd.f32 %v271, %v391
        %v393 = vpop.f32.mrb[0].mxu0
        %394 = vmatprep.mubr.f32.mxu0 0.0
        %v395 = vand.u32 %v189, 4294901760
        %396 = vmatmul.mubr.f32.gmra.mrb[0].mxu0 %v395
        %v397 = vpop.f32.mrb[0].mxu0
        %v398 = vadd.f32 %v281, %v397
        %v399 = vpop.f32.mrb[0].mxu0
        %400 = vdwg.mxu0
        %401 = vmatprep.subr.mxu0 0.0
        %v402 = vand.u32 %v176, 4294901760
        %v403 = vsub.f32 %v176, %v402
        %404 = vmatpush1.msra.mxu0 %v403
        %405 = vmatprep.subr.mxu0 0.0
        %v406 = vand.u32 %v177, 4294901760
        %v407 = vsub.f32 %v177, %v406
        %408 = vmatpush1.msra.mxu0 %v407
        %409 = vmatprep.subr.mxu0 0.0
        %v410 = vand.u32 %v178, 4294901760
        %v411 = vsub.f32 %v178, %v410
        %412 = vmatpush1.msra.mxu0 %v411
        %413 = vmatprep.subr.mxu0 0.0
        %v414 = vand.u32 %v179, 4294901760
        %v415 = vsub.f32 %v179, %v414
        %416 = vmatpush1.msra.mxu0 %v415
        %417 = vmatprep.subr.mxu0 0.0
        %v418 = vand.u32 %v180, 4294901760
        %v419 = vsub.f32 %v180, %v418
        %420 = vmatpush1.msra.mxu0 %v419
        %421 = vmatprep.subr.mxu0 0.0
        %v422 = vand.u32 %v181, 4294901760
        %v423 = vsub.f32 %v181, %v422
        %424 = vmatpush1.msra.mxu0 %v423
        %425 = vmatprep.subr.mxu0 0.0
        %v426 = vand.u32 %v182, 4294901760
        %v427 = vsub.f32 %v182, %v426
        %428 = vmatpush1.msra.mxu0 %v427
        %429 = vmatprep.subr.mxu0 0.0
        %v430 = vand.u32 %v183, 4294901760
        %v431 = vsub.f32 %v183, %v430
        %432 = vmatpush1.msra.mxu0 %v431
        %433 = vmatprep.subr.mxu0 0.0
        %434 = vmatpush1.msra.mxu0 0.0
        %435 = vmatprep.subr.mxu0 0.0
        %436 = vmatpush1.msra.mxu0 0.0
        %437 = vmatprep.subr.mxu0 0.0
        %438 = vmatpush1.msra.mxu0 0.0
        %439 = vmatprep.subr.mxu0 0.0
        %440 = vmatpush1.msra.mxu0 0.0
        %441 = vmatprep.subr.mxu0 0.0
        %442 = vmatpush1.msra.mxu0 0.0
        %443 = vmatprep.subr.mxu0 0.0
        %444 = vmatpush1.msra.mxu0 0.0
        %445 = vmatprep.subr.mxu0 0.0
        %446 = vmatpush1.msra.mxu0 0.0
        %447 = vmatprep.subr.mxu0 0.0
        %448 = vmatpush1.msra.mxu0 0.0
        %449 = vmatprep.subr.mxu0 0.0
        %450 = vmatpush1.msra.mxu0 0.0
        %451 = vmatprep.subr.mxu0 0.0
        %452 = vmatpush1.msra.mxu0 0.0
        %453 = vmatprep.subr.mxu0 0.0
        %454 = vmatpush1.msra.mxu0 0.0
        %455 = vmatprep.subr.mxu0 0.0
        %456 = vmatpush1.msra.mxu0 0.0
        %457 = vmatprep.subr.mxu0 0.0
        %458 = vmatpush1.msra.mxu0 0.0
        %459 = vmatprep.subr.mxu0 0.0
        %460 = vmatpush1.msra.mxu0 0.0
        %461 = vmatprep.subr.mxu0 0.0
        %462 = vmatpush1.msra.mxu0 0.0
        %463 = vmatprep.subr.mxu0 0.0
        %464 = vmatpush1.msra.mxu0 0.0
        %465 = vmatprep.subr.mxu0 0.0
        %466 = vmatpush1.msra.mxu0 0.0
        %467 = vmatprep.subr.mxu0 0.0
        %468 = vmatpush1.msra.mxu0 0.0
        %469 = vmatprep.subr.mxu0 0.0
        %470 = vmatpush1.msra.mxu0 0.0
        %471 = vmatprep.subr.mxu0 0.0
        %472 = vmatpush1.msra.mxu0 0.0
        %473 = vmatprep.subr.mxu0 0.0
        %474 = vmatpush1.msra.mxu0 0.0
        %475 = vmatprep.subr.mxu0 0.0
        %476 = vmatpush1.msra.mxu0 0.0
        %477 = vmatprep.subr.mxu0 0.0
        %478 = vmatpush1.msra.mxu0 0.0
        %479 = vmatprep.subr.mxu0 0.0
        %480 = vmatpush1.msra.mxu0 0.0
        %481 = vmatprep.mubr.f32.mxu0 0.0
        %v482 = vand.u32 %v186, 4294901760
        %v483 = vsub.f32 %v186, %v482
        %484 = vmatmul.mubr.f32.gmra.mrb[0].mxu0 %v483
        %v485 = vpop.f32.mrb[0].mxu0
        %v486 = vadd.f32 %v392, %v485
        %v487 = vpop.f32.mrb[0].mxu0
        %488 = vmatprep.mubr.f32.mxu0 0.0
        %v489 = vand.u32 %v189, 4294901760
        %v490 = vsub.f32 %v189, %v489
        %491 = vmatmul.mubr.f32.gmra.mrb[0].mxu0 %v490
        %v492 = vpop.f32.mrb[0].mxu0
        %v493 = vadd.f32 %v398, %v492
        %v494 = vpop.f32.mrb[0].mxu0
        %495 = vdwg.mxu0
        %496 = vmatprep.subr.mxu0 0.0
        %v497 = vand.u32 %v176, 4294901760
        %498 = vmatpush1.msra.mxu0 %v497
        %499 = vmatprep.subr.mxu0 0.0
        %v500 = vand.u32 %v177, 4294901760
        %501 = vmatpush1.msra.mxu0 %v500
        %502 = vmatprep.subr.mxu0 0.0
        %v503 = vand.u32 %v178, 4294901760
        %504 = vmatpush1.msra.mxu0 %v503
        %505 = vmatprep.subr.mxu0 0.0
        %v506 = vand.u32 %v179, 4294901760
        %507 = vmatpush1.msra.mxu0 %v506
        %508 = vmatprep.subr.mxu0 0.0
        %v509 = vand.u32 %v180, 4294901760
        %510 = vmatpush1.msra.mxu0 %v509
        %511 = vmatprep.subr.mxu0 0.0
        %v512 = vand.u32 %v181, 4294901760
        %513 = vmatpush1.msra.mxu0 %v512
        %514 = vmatprep.subr.mxu0 0.0
        %v515 = vand.u32 %v182, 4294901760
        %516 = vmatpush1.msra.mxu0 %v515
        %517 = vmatprep.subr.mxu0 0.0
        %v518 = vand.u32 %v183, 4294901760
        %519 = vmatpush1.msra.mxu0 %v518
        %520 = vmatprep.subr.mxu0 0.0
        %521 = vmatpush1.msra.mxu0 0.0
        %522 = vmatprep.subr.mxu0 0.0
        %523 = vmatpush1.msra.mxu0 0.0
        %524 = vmatprep.subr.mxu0 0.0
        %525 = vmatpush1.msra.mxu0 0.0
        %526 = vmatprep.subr.mxu0 0.0
        %527 = vmatpush1.msra.mxu0 0.0
        %528 = vmatprep.subr.mxu0 0.0
        %529 = vmatpush1.msra.mxu0 0.0
        %530 = vmatprep.subr.mxu0 0.0
        %531 = vmatpush1.msra.mxu0 0.0
        %532 = vmatprep.subr.mxu0 0.0
        %533 = vmatpush1.msra.mxu0 0.0
        %534 = vmatprep.subr.mxu0 0.0
        %535 = vmatpush1.msra.mxu0 0.0
        %536 = vmatprep.subr.mxu0 0.0
        %537 = vmatpush1.msra.mxu0 0.0
        %538 = vmatprep.subr.mxu0 0.0
        %539 = vmatpush1.msra.mxu0 0.0
        %540 = vmatprep.subr.mxu0 0.0
        %541 = vmatpush1.msra.mxu0 0.0
        %542 = vmatprep.subr.mxu0 0.0
        %543 = vmatpush1.msra.mxu0 0.0
        %544 = vmatprep.subr.mxu0 0.0
        %545 = vmatpush1.msra.mxu0 0.0
        %546 = vmatprep.subr.mxu0 0.0
        %547 = vmatpush1.msra.mxu0 0.0
        %548 = vmatprep.subr.mxu0 0.0
        %549 = vmatpush1.msra.mxu0 0.0
        %550 = vmatprep.subr.mxu0 0.0
        %551 = vmatpush1.msra.mxu0 0.0
        %552 = vmatprep.subr.mxu0 0.0
        %553 = vmatpush1.msra.mxu0 0.0
        %554 = vmatprep.subr.mxu0 0.0
        %555 = vmatpush1.msra.mxu0 0.0
        %556 = vmatprep.subr.mxu0 0.0
        %557 = vmatpush1.msra.mxu0 0.0
        %558 = vmatprep.subr.mxu0 0.0
        %559 = vmatpush1.msra.mxu0 0.0
        %560 = vmatprep.subr.mxu0 0.0
        %561 = vmatpush1.msra.mxu0 0.0
        %562 = vmatprep.subr.mxu0 0.0
        %563 = vmatpush1.msra.mxu0 0.0
        %564 = vmatprep.subr.mxu0 0.0
        %565 = vmatpush1.msra.mxu0 0.0
        %566 = vmatprep.subr.mxu0 0.0
        %567 = vmatpush1.msra.mxu0 0.0
        %568 = vmatprep.mubr.f32.mxu0 0.0
        %v569 = vand.u32 %v186, 4294901760
        %v570 = vsub.f32 %v186, %v569
        %v571 = vand.u32 %v570, 4294901760
        %572 = vmatmul.mubr.f32.gmra.mrb[0].mxu0 %v571
        %v573 = vpop.f32.mrb[0].mxu0
        %v574 = vadd.f32 %v486, %v573
        %v575 = vpop.f32.mrb[0].mxu0
        %576 = vmatprep.mubr.f32.mxu0 0.0
        %v577 = vand.u32 %v189, 4294901760
        %v578 = vsub.f32 %v189, %v577
        %v579 = vand.u32 %v578, 4294901760
        %580 = vmatmul.mubr.f32.gmra.mrb[0].mxu0 %v579
        %v581 = vpop.f32.mrb[0].mxu0
        %v582 = vadd.f32 %v493, %v581
        %v583 = vpop.f32.mrb[0].mxu0
        %584 = vdwg.mxu0
        %585 = vmatprep.subr.mxu0 0.0
        %v586 = vand.u32 %v176, 4294901760
        %v587 = vsub.f32 %v176, %v586
        %v588 = vand.u32 %v587, 4294901760
        %589 = vmatpush1.msra.mxu0 %v588
        %590 = vmatprep.subr.mxu0 0.0
        %v591 = vand.u32 %v177, 4294901760
        %v592 = vsub.f32 %v177, %v591
        %v593 = vand.u32 %v592, 4294901760
        %594 = vmatpush1.msra.mxu0 %v593
        %595 = vmatprep.subr.mxu0 0.0
        %v596 = vand.u32 %v178, 4294901760
        %v597 = vsub.f32 %v178, %v596
        %v598 = vand.u32 %v597, 4294901760
        %599 = vmatpush1.msra.mxu0 %v598
        %600 = vmatprep.subr.mxu0 0.0
        %v601 = vand.u32 %v179, 4294901760
        %v602 = vsub.f32 %v179, %v601
        %v603 = vand.u32 %v602, 4294901760
        %604 = vmatpush1.msra.mxu0 %v603
        %605 = vmatprep.subr.mxu0 0.0
        %v606 = vand.u32 %v180, 4294901760
        %v607 = vsub.f32 %v180, %v606
        %v608 = vand.u32 %v607, 4294901760
        %609 = vmatpush1.msra.mxu0 %v608
        %610 = vmatprep.subr.mxu0 0.0
        %v611 = vand.u32 %v181, 4294901760
        %v612 = vsub.f32 %v181, %v611
        %v613 = vand.u32 %v612, 4294901760
        %614 = vmatpush1.msra.mxu0 %v613
        %615 = vmatprep.subr.mxu0 0.0
        %v616 = vand.u32 %v182, 4294901760
        %v617 = vsub.f32 %v182, %v616
        %v618 = vand.u32 %v617, 4294901760
        %619 = vmatpush1.msra.mxu0 %v618
        %620 = vmatprep.subr.mxu0 0.0
        %v621 = vand.u32 %v183, 4294901760
        %v622 = vsub.f32 %v183, %v621
        %v623 = vand.u32 %v622, 4294901760
        %624 = vmatpush1.msra.mxu0 %v623
        %625 = vmatprep.subr.mxu0 0.0
        %626 = vmatpush1.msra.mxu0 0.0
        %627 = vmatprep.subr.mxu0 0.0
        %628 = vmatpush1.msra.mxu0 0.0
        %629 = vmatprep.subr.mxu0 0.0
        %630 = vmatpush1.msra.mxu0 0.0
        %631 = vmatprep.subr.mxu0 0.0
        %632 = vmatpush1.msra.mxu0 0.0
        %633 = vmatprep.subr.mxu0 0.0
        %634 = vmatpush1.msra.mxu0 0.0
        %635 = vmatprep.subr.mxu0 0.0
        %636 = vmatpush1.msra.mxu0 0.0
        %637 = vmatprep.subr.mxu0 0.0
        %638 = vmatpush1.msra.mxu0 0.0
        %639 = vmatprep.subr.mxu0 0.0
        %640 = vmatpush1.msra.mxu0 0.0
        %641 = vmatprep.subr.mxu0 0.0
        %642 = vmatpush1.msra.mxu0 0.0
        %643 = vmatprep.subr.mxu0 0.0
        %644 = vmatpush1.msra.mxu0 0.0
        %645 = vmatprep.subr.mxu0 0.0
        %646 = vmatpush1.msra.mxu0 0.0
        %647 = vmatprep.subr.mxu0 0.0
        %648 = vmatpush1.msra.mxu0 0.0
        %649 = vmatprep.subr.mxu0 0.0
        %650 = vmatpush1.msra.mxu0 0.0
        %651 = vmatprep.subr.mxu0 0.0
        %652 = vmatpush1.msra.mxu0 0.0
        %653 = vmatprep.subr.mxu0 0.0
        %654 = vmatpush1.msra.mxu0 0.0
        %655 = vmatprep.subr.mxu0 0.0
        %656 = vmatpush1.msra.mxu0 0.0
        %657 = vmatprep.subr.mxu0 0.0
        %658 = vmatpush1.msra.mxu0 0.0
        %659 = vmatprep.subr.mxu0 0.0
        %660 = vmatpush1.msra.mxu0 0.0
        %661 = vmatprep.subr.mxu0 0.0
        %662 = vmatpush1.msra.mxu0 0.0
        %663 = vmatprep.subr.mxu0 0.0
        %664 = vmatpush1.msra.mxu0 0.0
        %665 = vmatprep.subr.mxu0 0.0
        %666 = vmatpush1.msra.mxu0 0.0
        %667 = vmatprep.subr.mxu0 0.0
        %668 = vmatpush1.msra.mxu0 0.0
        %669 = vmatprep.subr.mxu0 0.0
        %670 = vmatpush1.msra.mxu0 0.0
        %671 = vmatprep.subr.mxu0 0.0
        %672 = vmatpush1.msra.mxu0 0.0
        %673 = vmatprep.mubr.f32.mxu0 0.0
        %v674 = vand.u32 %v186, 4294901760
        %675 = vmatmul.mubr.f32.gmra.mrb[0].mxu0 %v674
        %v676 = vpop.f32.mrb[0].mxu0
        %v677 = vadd.f32 %v574, %v676
        %v678 = vpop.f32.mrb[0].mxu0
        %679 = vmatprep.mubr.f32.mxu0 0.0
        %v680 = vand.u32 %v189, 4294901760
        %681 = vmatmul.mubr.f32.gmra.mrb[0].mxu0 %v680
        %v682 = vpop.f32.mrb[0].mxu0
        %v683 = vadd.f32 %v582, %v682
        %v684 = vpop.f32.mrb[0].mxu0
        %685 = vdwg.mxu0
        %686 = vmatprep.subr.mxu0 0.0
        %v687 = vand.u32 %v176, 4294901760
        %688 = vmatpush1.msra.mxu0 %v687
        %689 = vmatprep.subr.mxu0 0.0
        %v690 = vand.u32 %v177, 4294901760
        %691 = vmatpush1.msra.mxu0 %v690
        %692 = vmatprep.subr.mxu0 0.0
        %v693 = vand.u32 %v178, 4294901760
        %694 = vmatpush1.msra.mxu0 %v693
        %695 = vmatprep.subr.mxu0 0.0
        %v696 = vand.u32 %v179, 4294901760
        %697 = vmatpush1.msra.mxu0 %v696
        %698 = vmatprep.subr.mxu0 0.0
        %v699 = vand.u32 %v180, 4294901760
        %700 = vmatpush1.msra.mxu0 %v699
        %701 = vmatprep.subr.mxu0 0.0
        %v702 = vand.u32 %v181, 4294901760
        %703 = vmatpush1.msra.mxu0 %v702
        %704 = vmatprep.subr.mxu0 0.0
        %v705 = vand.u32 %v182, 4294901760
        %706 = vmatpush1.msra.mxu0 %v705
        %707 = vmatprep.subr.mxu0 0.0
        %v708 = vand.u32 %v183, 4294901760
        %709 = vmatpush1.msra.mxu0 %v708
        %710 = vmatprep.subr.mxu0 0.0
        %711 = vmatpush1.msra.mxu0 0.0
        %712 = vmatprep.subr.mxu0 0.0
        %713 = vmatpush1.msra.mxu0 0.0
        %714 = vmatprep.subr.mxu0 0.0
        %715 = vmatpush1.msra.mxu0 0.0
        %716 = vmatprep.subr.mxu0 0.0
        %717 = vmatpush1.msra.mxu0 0.0
        %718 = vmatprep.subr.mxu0 0.0
        %719 = vmatpush1.msra.mxu0 0.0
        %720 = vmatprep.subr.mxu0 0.0
        %721 = vmatpush1.msra.mxu0 0.0
        %722 = vmatprep.subr.mxu0 0.0
        %723 = vmatpush1.msra.mxu0 0.0
        %724 = vmatprep.subr.mxu0 0.0
        %725 = vmatpush1.msra.mxu0 0.0
        %726 = vmatprep.subr.mxu0 0.0
        %727 = vmatpush1.msra.mxu0 0.0
        %728 = vmatprep.subr.mxu0 0.0
        %729 = vmatpush1.msra.mxu0 0.0
        %730 = vmatprep.subr.mxu0 0.0
        %731 = vmatpush1.msra.mxu0 0.0
        %732 = vmatprep.subr.mxu0 0.0
        %733 = vmatpush1.msra.mxu0 0.0
        %734 = vmatprep.subr.mxu0 0.0
        %735 = vmatpush1.msra.mxu0 0.0
        %736 = vmatprep.subr.mxu0 0.0
        %737 = vmatpush1.msra.mxu0 0.0
        %738 = vmatprep.subr.mxu0 0.0
        %739 = vmatpush1.msra.mxu0 0.0
        %740 = vmatprep.subr.mxu0 0.0
        %741 = vmatpush1.msra.mxu0 0.0
        %742 = vmatprep.subr.mxu0 0.0
        %743 = vmatpush1.msra.mxu0 0.0
        %744 = vmatprep.subr.mxu0 0.0
        %745 = vmatpush1.msra.mxu0 0.0
        %746 = vmatprep.subr.mxu0 0.0
        %747 = vmatpush1.msra.mxu0 0.0
        %748 = vmatprep.subr.mxu0 0.0
        %749 = vmatpush1.msra.mxu0 0.0
        %750 = vmatprep.subr.mxu0 0.0
        %751 = vmatpush1.msra.mxu0 0.0
        %752 = vmatprep.subr.mxu0 0.0
        %753 = vmatpush1.msra.mxu0 0.0
        %754 = vmatprep.subr.mxu0 0.0
        %755 = vmatpush1.msra.mxu0 0.0
        %756 = vmatprep.subr.mxu0 0.0
        %757 = vmatpush1.msra.mxu0 0.0
        %758 = vmatprep.mubr.f32.mxu0 0.0
        %v759 = vand.u32 %v186, 4294901760
        %760 = vmatmul.mubr.f32.gmra.mrb[0].mxu0 %v759
        %v761 = vpop.f32.mrb[0].mxu0
        %v762 = vadd.f32 %v677, %v761
        %v763 = vpop.f32.mrb[0].mxu0
        %764 = vmatprep.mubr.f32.mxu0 0.0
        %v765 = vand.u32 %v189, 4294901760
        %766 = vmatmul.mubr.f32.gmra.mrb[0].mxu0 %v765
        %v767 = vpop.f32.mrb[0].mxu0
        %v768 = vadd.f32 %v683, %v767
        %v769 = vpop.f32.mrb[0].mxu0
        %770 = vdwg.mxu0
        %771 = vst [vmem:[%s152] sm:$0xff] %v762
        %772 = vst [vmem:[%s152 + $0x8] sm:$0xff] %v768
        %s773 = sand.u32 %s72, 1
        %s774 = scalar_lea.sflag [#allocation4], %s773
        %s775 = sand.u32 %s72, 1
        %s776 = smul.addr %s775, 16
        %s777 = scalar_lea.vmem [#allocation5], %s776
        // Predicated region
        $region33: #{image_token_encoder_embedding.1} parent=27 // pred_check
          %p778 = pneg %p82
        $region34: #{image_token_encoder_embedding.1} parent=27 // pred_check_branch
          %780 = sbr.rel (%p778) target = $region36
        $region35: #{image_token_encoder_embedding.1} parent=27 // pred_region
          %s781 = smul.u32 2, %s17
          %s783 = ssub.s32 256, 256
          %784 = vsyncadd %s774, %s783
          %s785 = smul.addr %s781, 128
          %s786 = scalar_lea.hbm %s2, %s785
          %s787 = sshll.u32 %s777, 4
          %s788 = int_to_ptr.vmem [resolvable:$true] %s787
          %793 = dma.vmem_to_hbm [thread:$0]  %s788, 256, %s786, %s774, 128, 128, 8
        $region36: #{image_token_encoder_embedding.1} parent=27 // pred_fallthru
          _
      $region28: #{image_token_encoder_embedding.1} parent=5 // pred_fallthru
        _
      %p794 = scmp.le.s32.totalorder 2, %s12
      // Predicated region
      $region37: #{image_token_encoder_embedding.1} parent=5 // pred_check
        %p795 = pneg %p794
      $region38: #{image_token_encoder_embedding.1} parent=5 // pred_check_branch
        %797 = sbr.rel (%p795) target = $region40
      $region39: #{image_token_encoder_embedding.1} parent=5 // pred_region
        %s798 = ssub.s32 %s12, 2
        // Predicated region
        $region41: #{image_token_encoder_embedding.1} parent=39 // pred_check
          %p799 = pneg %p88
        $region42: #{image_token_encoder_embedding.1} parent=39 // pred_check_branch
          %801 = sbr.rel (%p799) target = $region44
        $region43: #{image_token_encoder_embedding.1} parent=39 // pred_region
          %s802 = sand.u32 %s73, 1
          %s803 = scalar_lea.sflag [#allocation4], %s802
          %s804 = sand.u32 %s73, 1
          %s805 = smul.addr %s804, 16
          %s806 = scalar_lea.vmem [#allocation5], %s805
          %807 = dma.done %s803, 256
        $region44: #{image_token_encoder_embedding.1} parent=39 // pred_fallthru
          _
      $region40: #{image_token_encoder_embedding.1} parent=5 // pred_fallthru
        _
    $region6: #{image_token_encoder_embedding.1} parent=1 // loop_footer
      %s16 = sadd.s32 1, %s12
    $region7: #{image_token_encoder_embedding.1} parent=1 // loop_footer_branch
      %11 = sbr.rel target = $region3
    $region8: #{image_token_encoder_embedding.1} parent=1 // loop_exit
      _
    %808 = vsyncpa [#allocation3], 1
    %s809 = scalar_lea.sflag [#allocation3], 1
    %810 = vsyncpa %s809, 1
    %811 = vsyncpa [#allocation4], 1
    %s812 = scalar_lea.sflag [#allocation4], 1
    %813 = vsyncpa %s812, 1

</llo_original>
